<compile_context>
chip_gen: v5e
topology: v5e:2x2
jax: 0.10.0
libtpu: 0.0.40
codegen_flags: <defaults>
</compile_context>

<pallas_src>
import functools

import jax
import jax.numpy as jnp
from jax.experimental import pallas as pl
from jax.experimental.pallas import tpu as pltpu


def _da_kernel(x_ref, w1_ref, w2_ref, o_ref, acc_ref, *, inv_n):
    """x_ref: (1, C, tn) tile.  w1: (C//2, C).  w2: (C, C//2).  o: (1, C, 1)."""
    n_idx = pl.program_id(1)

    # Init the running channel-sum accumulator on the first N tile.
    @pl.when(n_idx == 0)
    def _():
        acc_ref[...] = jnp.zeros_like(acc_ref)

    # Partial sum of this N tile (lane-axis reduction on the XLU) -> (C, 1).
    acc_ref[...] += jnp.sum(x_ref[0], axis=-1, keepdims=True)

    # Epilogue on the last N tile: mean, FC, ReLU, FC, Sigmoid.
    @pl.when(n_idx == pl.num_programs(1) - 1)
    def _():
        pooled = acc_ref[...] * inv_n                                   # (C, 1)
        h = jnp.dot(w1_ref[...], pooled,
                    preferred_element_type=jnp.float32)                 # (C//2, 1)
        h = jnp.maximum(h, 0.0)                                         # ReLU
        y = jnp.dot(w2_ref[...], h,
                    preferred_element_type=jnp.float32)                 # (C, 1)
        o_ref[0] = (1.0 / (1.0 + jnp.exp(-y))).astype(o_ref.dtype)      # Sigmoid


def _pick_n_tile(n, max_tile=2048):
    """Largest 128-multiple divisor of n that is <= max_tile (else n itself)."""
    if n <= max_tile:
        return n
    if n % 128 == 0:
        t = max_tile - (max_tile % 128)
        while t >= 128:
            if n % t == 0:
                return t
            t -= 128
    # Fallback: single block.  Fine for the sizes this module is used with.
    return n


@jax.jit
def da_forward(x, w1, w2):
    """x: (B, C, T, H, W) f32; w1: (C//2, C); w2: (C_out, C//2) -> (B, C, 1, 1, 1)."""
    B, C, T, H, W = x.shape
    N = T * H * W
    C_half = w1.shape[0]
    C_out = w2.shape[0]
    assert w1.shape == (C_half, C)
    assert w2.shape == (C_out, C_half)
    # DA.forward does fc(x).view(b, c, 1, 1, 1): only well-formed if C_out == C.
    assert C_out == C, "DA requires out_channels == in_channels"

    x_flat = x.reshape(B, C, N)
    tn = _pick_n_tile(N)
    n_blocks = N // tn

    kernel = functools.partial(_da_kernel, inv_n=1.0 / N)

    cost = pl.CostEstimate(
        flops=2 * B * C * N + 4 * B * C * C_half,
        transcendentals=B * C,
        bytes_accessed=4 * (B * C * N + C_half * C + C * C_half + B * C),
    )

    out = pl.pallas_call(
        kernel,
        out_shape=jax.ShapeDtypeStruct((B, C, 1), jnp.float32),
        grid=(B, n_blocks),
        in_specs=[
            pl.BlockSpec((1, C, tn), lambda b, n: (b, 0, n)),   # x tile
            pl.BlockSpec((C_half, C), lambda b, n: (0, 0)),     # W1 (resident)
            pl.BlockSpec((C, C_half), lambda b, n: (0, 0)),     # W2 (resident)
        ],
        out_specs=pl.BlockSpec((1, C, 1), lambda b, n: (b, 0, 0)),
        scratch_shapes=[pltpu.VMEM((C, 1), jnp.float32)],        # running channel sums
        compiler_params=pltpu.CompilerParams(
            dimension_semantics=("parallel", "arbitrary"),       # batch || , N = reduction
        ),
        cost_estimate=cost,
    )(x_flat, w1, w2)

    return out.reshape(B, C, 1, 1, 1)


def _reference(x, w1, w2):
    """Plain-JAX reference matching the PyTorch forward."""
    B, C = x.shape[:2]
    pooled = jnp.mean(x, axis=(2, 3, 4))            # (B, C)
    h = jax.nn.relu(pooled @ w1.T)                  # (B, C//2)
    y = jax.nn.sigmoid(h @ w2.T)                    # (B, C)
    return y.reshape(B, C, 1, 1, 1)


if __name__ == "__main__":
    # Small deterministic problem: N = T*H*W = 128 (lane-aligned), C_out == C.
    B, C, T, H, W = 2, 16, 2, 8, 8

    key = jax.random.PRNGKey(0)
    kx, k1, k2 = jax.random.split(key, 3)
    x = jax.random.normal(kx, (B, C, T, H, W), dtype=jnp.float32)
    w1 = 0.3 * jax.random.normal(k1, (C // 2, C), dtype=jnp.float32)   # Linear(C -> C//2)
    w2 = 0.3 * jax.random.normal(k2, (C, C // 2), dtype=jnp.float32)   # Linear(C//2 -> C)

    out = jax.block_until_ready(da_forward(x, w1, w2))
    ref = _reference(x, w1, w2)

    assert out.shape == (B, C, 1, 1, 1)
    assert jnp.allclose(out, ref, atol=1e-5, rtol=1e-5), "mismatch vs reference"

    print("KERNEL_OK")
</pallas_src>

<mosaic_0001>
module attributes {stable_mosaic.version = 11 : i64} {
  func.func @_da_kernel(%arg0: i32, %arg1: i32, %arg2: memref<1x16x128xf32, #tpu.memory_space<vmem>>, %arg3: memref<8x16xf32, #tpu.memory_space<vmem>>, %arg4: memref<16x8xf32, #tpu.memory_space<vmem>>, %arg5: memref<1x16x1xf32, #tpu.memory_space<vmem>>, %arg6: memref<16x1xf32, #tpu.memory_space<vmem>>) attributes {dimension_semantics = [#tpu.dimension_semantics<parallel>, #tpu.dimension_semantics<arbitrary>], iteration_bounds = array<i64: 2, 1>, scalar_prefetch = 0 : i64, scratch_operands = 1 : i64, tpu.core_type = #tpu.core_type<tc>, window_params = [{transform_indices = @transform_0, window_bounds = array<i64: 1, 16, 128>}, {pipeline_mode = #tpu.pipeline_mode<synchronous>, transform_indices = @transform_1, window_bounds = array<i64: 8, 16>}, {pipeline_mode = #tpu.pipeline_mode<synchronous>, transform_indices = @transform_2, window_bounds = array<i64: 16, 8>}, {transform_indices = @transform_3, window_bounds = array<i64: 1, 16, 1>}]} {
    %c0_i32 = arith.constant 0 : i32
    %0 = arith.cmpi eq, %arg1, %c0_i32 : i32
    %1 = arith.extui %0 : i1 to i32
    %c0_i32_0 = arith.constant 0 : i32
    %2 = arith.cmpi ne, %1, %c0_i32_0 : i32
    scf.if %2 {
      %cst_9 = arith.constant 0.000000e+00 : f32
      %13 = vector.broadcast %cst_9 : f32 to vector<16x1xf32>
      %c0_10 = arith.constant 0 : index
      %c0_11 = arith.constant 0 : index
      %14 = vector.load %arg6[%c0_10, %c0_11] : memref<16x1xf32, #tpu.memory_space<vmem>>, vector<16x1xf32>
      tpu.vector_store %arg6[%c0_10, %c0_11], %13 {strides = array<i32>} : memref<16x1xf32, #tpu.memory_space<vmem>>, vector<16x1xf32>,
    } else {
    }
    %c0 = arith.constant 0 : index
    %c0_1 = arith.constant 0 : index
    %3 = vector.load %arg6[%c0, %c0_1] : memref<16x1xf32, #tpu.memory_space<vmem>>, vector<16x1xf32>
    %c0_2 = arith.constant 0 : index
    %c0_3 = arith.constant 0 : index
    %c0_4 = arith.constant 0 : index
    %4 = vector.load %arg2[%c0_2, %c0_3, %c0_4] : memref<1x16x128xf32, #tpu.memory_space<vmem>>, vector<1x16x128xf32>
    %5 = vector.shape_cast %4 : vector<1x16x128xf32> to vector<16x128xf32>
    %cst = arith.constant dense<0.000000e+00> : vector<16xf32>
    %6 = vector.multi_reduction <add>, %5, %cst [1] : vector<16x128xf32> to vector<16xf32>
    %7 = vector.shape_cast %6 : vector<16xf32> to vector<16x1xf32>
    %8 = arith.addf %3, %7 : vector<16x1xf32>
    %c0_5 = arith.constant 0 : index
    %c0_6 = arith.constant 0 : index
    %9 = vector.load %arg6[%c0_5, %c0_6] : memref<16x1xf32, #tpu.memory_space<vmem>>, vector<16x1xf32>
    tpu.vector_store %arg6[%c0_5, %c0_6], %8 {strides = array<i32>} : memref<16x1xf32, #tpu.memory_space<vmem>>, vector<16x1xf32>,
    %c0_i32_7 = arith.constant 0 : i32
    %10 = arith.cmpi eq, %arg1, %c0_i32_7 : i32
    %11 = arith.extui %10 : i1 to i32
    %c0_i32_8 = arith.constant 0 : i32
    %12 = arith.cmpi ne, %11, %c0_i32_8 : i32
    scf.if %12 {
      %c0_9 = arith.constant 0 : index
      %c0_10 = arith.constant 0 : index
      %13 = vector.load %arg6[%c0_9, %c0_10] : memref<16x1xf32, #tpu.memory_space<vmem>>, vector<16x1xf32>
      %cst_11 = arith.constant 7.812500e-03 : f32
      %14 = vector.broadcast %cst_11 : f32 to vector<16x1xf32>
      %15 = arith.mulf %13, %14 : vector<16x1xf32>
      %c0_12 = arith.constant 0 : index
      %c0_13 = arith.constant 0 : index
      %16 = vector.load %arg3[%c0_12, %c0_13] : memref<8x16xf32, #tpu.memory_space<vmem>>, vector<8x16xf32>
      %cst_14 = arith.constant dense<0.000000e+00> : vector<8x1xf32>
      %17 = tpu.matmul %16, %15, %cst_14 {dimension_numbers = #tpu.dot_dimension_numbers<[1], [0], [0], [1], [0, 0, 1, 1], [], []>} : vector<8x16xf32>, vector<16x1xf32>, vector<8x1xf32> -> vector<8x1xf32>
      %cst_15 = arith.constant 0.000000e+00 : f32
      %18 = vector.broadcast %cst_15 : f32 to vector<8x1xf32>
      %19 = arith.maximumf %17, %18 : vector<8x1xf32>
      %c0_16 = arith.constant 0 : index
      %c0_17 = arith.constant 0 : index
      %20 = vector.load %arg4[%c0_16, %c0_17] : memref<16x8xf32, #tpu.memory_space<vmem>>, vector<16x8xf32>
      %cst_18 = arith.constant dense<0.000000e+00> : vector<16x1xf32>
      %21 = tpu.matmul %20, %19, %cst_18 {dimension_numbers = #tpu.dot_dimension_numbers<[1], [0], [0], [1], [0, 0, 1, 1], [], []>} : vector<16x8xf32>, vector<8x1xf32>, vector<16x1xf32> -> vector<16x1xf32>
      %cst_19 = arith.constant 0.000000e+00 : f32
      %22 = vector.broadcast %cst_19 : f32 to vector<16x1xf32>
      %23 = arith.subf %22, %21 : vector<16x1xf32>
      %24 = math.exp %23 : vector<16x1xf32>
      %cst_20 = arith.constant 1.000000e+00 : f32
      %25 = vector.broadcast %cst_20 : f32 to vector<16x1xf32>
      %26 = arith.addf %25, %24 : vector<16x1xf32>
      %cst_21 = arith.constant 1.000000e+00 : f32
      %27 = vector.broadcast %cst_21 : f32 to vector<16x1xf32>
      %28 = arith.divf %27, %26 : vector<16x1xf32>
      %c0_22 = arith.constant 0 : index
      %c0_23 = arith.constant 0 : index
      %c0_24 = arith.constant 0 : index
      %29 = vector.load %arg5[%c0_22, %c0_23, %c0_24] : memref<1x16x1xf32, #tpu.memory_space<vmem>>, vector<1x16x1xf32>
      %30 = vector.shape_cast %29 : vector<1x16x1xf32> to vector<16x1xf32>
      %31 = vector.shape_cast %28 : vector<16x1xf32> to vector<1x16x1xf32>
      tpu.vector_store %arg5[%c0_22, %c0_23, %c0_24], %31 {strides = array<i32>} : memref<1x16x1xf32, #tpu.memory_space<vmem>>, vector<1x16x1xf32>,
    } else {
    }
    return
  }
  func.func @transform_0(%arg0: i32, %arg1: i32) -> (i32, i32, i32) {
    %c0_i32 = arith.constant 0 : i32
    %c0_i32_0 = arith.constant 0 : i32
    return %arg0, %c0_i32, %arg1 : i32, i32, i32
  }
  func.func @transform_1(%arg0: i32, %arg1: i32) -> (i32, i32) {
    %c0_i32 = arith.constant 0 : i32
    %c0_i32_0 = arith.constant 0 : i32
    %c0_i32_1 = arith.constant 0 : i32
    return %c0_i32, %c0_i32_0 : i32, i32
  }
  func.func @transform_2(%arg0: i32, %arg1: i32) -> (i32, i32) {
    %c0_i32 = arith.constant 0 : i32
    %c0_i32_0 = arith.constant 0 : i32
    %c0_i32_1 = arith.constant 0 : i32
    return %c0_i32, %c0_i32_0 : i32, i32
  }
  func.func @transform_3(%arg0: i32, %arg1: i32) -> (i32, i32, i32) {
    %c0_i32 = arith.constant 0 : i32
    %c0_i32_0 = arith.constant 0 : i32
    %c0_i32_1 = arith.constant 0 : i32
    return %arg0, %c0_i32, %c0_i32_0 : i32, i32, i32
  }
}

</mosaic_0001>

<llo_original>
// kernel: da_forward.1
$region0: #{da_forward.1}
  #allocation0 [shape = 'u32[]', space=smem, size = 0x4, offset = 0x4, fixed_abs, tag = 'smem constant byte address 0x4 - core index']
  #allocation1 [shape = 'u32[72,128]{1,0:T(1,128)}', space=vmem, size = 0x9000, scoped, tag = 'internal scratch']
  #allocation2 [shape = 'f32[16,1]{1,0:T(8,128)}', space=vmem, size = 0x2000, scoped, tag = 'scratch operand']
  %s0 = inlined_call_operand.vmem [shape: f32[2,16,128], index: 0, kind: input, shape index: {}]
  %s1 = inlined_call_operand.vmem [shape: f32[8,16], index: 1, kind: input, shape index: {}]
  %s2 = inlined_call_operand.vmem [shape: f32[16,8], index: 2, kind: input, shape index: {}]
  %s3 = inlined_call_operand.vmem [shape: f32[2,16,1], index: 3, kind: output, shape index: {}]
  %s4 = sld [smem:[#allocation0]]
  $region53: #{da_forward.1} parent=0
    _
  %s6 = ssub.s32 1, %s4
  %s7 = scalar_select 0, %s6, %s4
  loop: start=0, step=1, limit=4
  $region2: #{da_forward.1} parent=0 // loop_pre_header
    _
  $region3: #{da_forward.1} parent=0 // loop_header
    %s9 = sphi 0, %s13
    %p10 = scmp.ge.s32.totalorder %s9, 4
    %s16 = sphi 0, %s28
    %s17 = sphi 0, %s24
    %s18 = sphi 0, %s16
    %s19 = sphi 0, %s17
    %s20 = sphi 0, %s18
    %s21 = sphi 0, %s19
    %s33 = sphi 0, %s35
    %s36 = sphi 0, %s33
    %s37 = sphi 0, %s36
    %s53 = sphi 0, %s37
    %s57 = sphi 0, %s57
    %s59 = sphi 0, %s57
    %s60 = sphi 0, %s59
    %s74 = sphi 0, %s60
    %s78 = sphi 0, %s78
    %s80 = sphi 0, %s78
    %s81 = sphi 0, %s80
    %s95 = sphi 0, %s81
    %s101 = sphi 0, %s103
    %s104 = sphi 0, %s101
    %s105 = sphi 0, %s104
    %s121 = sphi 0, %s105
  $region4: #{da_forward.1} parent=0 // loop_header_branch
    %12 = sbr.rel (%p10) target = $region8
  $region5: #{da_forward.1} parent=0 // loop_body
    %s14 = ssub.s32 %s9, 1
    %s15 = ssub.s32 %s9, 2
    %s22 = sadd.s32 1, %s17
    %p23 = scmp.ge.s32.totalorder %s22, 1
    %s24 = scalar_select %p23, 0, %s22
    %s25 = sadd.s32 1, %s16
    %s26 = scalar_select %p23, %s25, %s16
    %p27 = scmp.ge.s32.totalorder %s26, 2
    %s28 = scalar_select %p27, 0, %s26
    %s29 = ssub.s32 %s16, %s28
    %s30 = ssub.s32 %s17, %s24
    %s31 = sor.u32 %s29, %s30
    %p32 = scmp.eq.s32.totalorder %s31, 0
    %s34 = sadd.s32 %s33, 1
    %s35 = scalar_select %p32, %s33, %s34
    %p38 = pneg %p32
    %p39 = scmp.eq.s32.totalorder %s9, 1
    %p40 = por %p38, %p39
    %p41 = scmp.ne.s32.totalorder %s33, %s36
    %p42 = scmp.eq.s32.totalorder %s9, 0
    %p43 = por %p41, %p42
    %p44 = scmp.ne.s32.totalorder %s33, %s36
    %p45 = scmp.eq.s32.totalorder %s14, 1
    %p46 = por %p44, %p45
    %p47 = scmp.ne.s32.totalorder %s36, %s37
    %p48 = scmp.eq.s32.totalorder %s14, 0
    %p49 = por %p47, %p48
    %p50 = scmp.ne.s32.totalorder %s36, %s37
    %p51 = scmp.eq.s32.totalorder %s15, 1
    %p52 = por %p50, %p51
    %p54 = scmp.ne.s32.totalorder %s37, %s53
    %p55 = scmp.eq.s32.totalorder %s15, 0
    %p56 = por %p54, %p55
    %s58 = sadd.s32 %s57, 1
    %p61 = scmp.eq.s32.totalorder %s9, 1
    %p62 = scmp.ne.s32.totalorder %s57, %s59
    %p63 = scmp.eq.s32.totalorder %s9, 0
    %p64 = por %p62, %p63
    %p65 = scmp.ne.s32.totalorder %s57, %s59
    %p66 = scmp.eq.s32.totalorder %s14, 1
    %p67 = por %p65, %p66
    %p68 = scmp.ne.s32.totalorder %s59, %s60
    %p69 = scmp.eq.s32.totalorder %s14, 0
    %p70 = por %p68, %p69
    %p71 = scmp.ne.s32.totalorder %s59, %s60
    %p72 = scmp.eq.s32.totalorder %s15, 1
    %p73 = por %p71, %p72
    %p75 = scmp.ne.s32.totalorder %s60, %s74
    %p76 = scmp.eq.s32.totalorder %s15, 0
    %p77 = por %p75, %p76
    %s79 = sadd.s32 %s78, 1
    %p82 = scmp.eq.s32.totalorder %s9, 1
    %p83 = scmp.ne.s32.totalorder %s78, %s80
    %p84 = scmp.eq.s32.totalorder %s9, 0
    %p85 = por %p83, %p84
    %p86 = scmp.ne.s32.totalorder %s78, %s80
    %p87 = scmp.eq.s32.totalorder %s14, 1
    %p88 = por %p86, %p87
    %p89 = scmp.ne.s32.totalorder %s80, %s81
    %p90 = scmp.eq.s32.totalorder %s14, 0
    %p91 = por %p89, %p90
    %p92 = scmp.ne.s32.totalorder %s80, %s81
    %p93 = scmp.eq.s32.totalorder %s15, 1
    %p94 = por %p92, %p93
    %p96 = scmp.ne.s32.totalorder %s81, %s95
    %p97 = scmp.eq.s32.totalorder %s15, 0
    %p98 = por %p96, %p97
    %s99 = ssub.s32 %s16, %s28
    %p100 = scmp.eq.s32.totalorder %s99, 0
    %s102 = sadd.s32 %s101, 1
    %s103 = scalar_select %p100, %s101, %s102
    %p106 = pneg %p100
    %p107 = scmp.eq.s32.totalorder %s9, 1
    %p108 = por %p106, %p107
    %p109 = scmp.ne.s32.totalorder %s101, %s104
    %p110 = scmp.eq.s32.totalorder %s9, 0
    %p111 = por %p109, %p110
    %p112 = scmp.ne.s32.totalorder %s101, %s104
    %p113 = scmp.eq.s32.totalorder %s14, 1
    %p114 = por %p112, %p113
    %p115 = scmp.ne.s32.totalorder %s104, %s105
    %p116 = scmp.eq.s32.totalorder %s14, 0
    %p117 = por %p115, %p116
    %p118 = scmp.ne.s32.totalorder %s104, %s105
    %p119 = scmp.eq.s32.totalorder %s15, 1
    %p120 = por %p118, %p119
    %p122 = scmp.ne.s32.totalorder %s105, %s121
    %p123 = scmp.eq.s32.totalorder %s15, 0
    %p124 = por %p122, %p123
    %p125 = scmp.le.s32.totalorder 1, %s9
    %p126 = scmp.lt.s32.totalorder %s9, 3
    %p127 = pnand %p125, %p126
    %p128 = pneg %p127
    // Predicated region
    $region9: #{da_forward.1} parent=5 // pred_check
      _
    $region10: #{da_forward.1} parent=5 // pred_check_branch
      %130 = sbr.rel (%p127) target = $region12
    $region11: #{da_forward.1} parent=5 // pred_region
      %s131 = ssub.s32 %s9, 1
      // Predicated region
      $region13: #{da_forward.1} parent=11 // pred_check
        %p132 = pneg %p70
      $region14: #{da_forward.1} parent=11 // pred_check_branch
        %134 = sbr.rel (%p132) target = $region16
      $region15: #{da_forward.1} parent=11 // pred_region
        _
      $region16: #{da_forward.1} parent=11 // pred_fallthru
        _
      // Predicated region
      $region17: #{da_forward.1} parent=11 // pred_check
        %p135 = pneg %p91
      $region18: #{da_forward.1} parent=11 // pred_check_branch
        %137 = sbr.rel (%p135) target = $region20
      $region19: #{da_forward.1} parent=11 // pred_region
        _
      $region20: #{da_forward.1} parent=11 // pred_fallthru
        _
    $region12: #{da_forward.1} parent=5 // pred_fallthru
      _
    %p138 = scmp.lt.s32.totalorder %s9, 2
    // Predicated region
    $region21: #{da_forward.1} parent=5 // pred_check
      %p139 = pneg %p138
    $region22: #{da_forward.1} parent=5 // pred_check_branch
      %141 = sbr.rel (%p139) target = $region24
    $region23: #{da_forward.1} parent=5 // pred_region
      // Predicated region
      $region25: #{da_forward.1} parent=23 // pred_check
        %p142 = pneg %p43
      $region26: #{da_forward.1} parent=23 // pred_check_branch
        %144 = sbr.rel (%p142) target = $region28
      $region27: #{da_forward.1} parent=23 // pred_region
        %p145 = scmp.lt.s32.totalorder %s16, 1
        %s146 = scalar_select %p145, %s16, 1
        %p147 = scmp.lt.s32.totalorder %s17, 0
        %s148 = scalar_select %p147, %s17, 0
        %s149 = smul.addr %s146, 2
        %s150 = sadd.s32 %s148, %s149
        %s151 = smul.addr %s150, 8
        %s152 = scalar_lea.vmem %s0, %s151
      $region28: #{da_forward.1} parent=23 // pred_fallthru
        _
    $region24: #{da_forward.1} parent=5 // pred_fallthru
      _
    %p153 = scmp.le.s32.totalorder 1, %s9
    %p154 = scmp.lt.s32.totalorder %s9, 3
    %p155 = pnand %p153, %p154
    %p156 = pneg %p155
    // Predicated region
    $region29: #{da_forward.1} parent=5 // pred_check
      _
    $region30: #{da_forward.1} parent=5 // pred_check_branch
      %158 = sbr.rel (%p155) target = $region32
    $region31: #{da_forward.1} parent=5 // pred_region
      %s159 = ssub.s32 %s9, 1
      %p160 = scmp.lt.s32.totalorder %s18, 1
      %s161 = scalar_select %p160, %s18, 1
      %p162 = scmp.lt.s32.totalorder %s19, 0
      %s163 = scalar_select %p162, %s19, 0
      %s164 = smul.addr %s161, 2
      %s165 = sadd.s32 %s163, %s164
      %s166 = smul.addr %s165, 8
      %s167 = scalar_lea.vmem %s0, %s166
      %p168 = pneg %p49
      %p169 = pneg %p46
      %p170 = pneg %p70
      %p171 = pneg %p67
      %p172 = pneg %p91
      %p173 = pneg %p88
      %p174 = pneg %p117
      %p175 = pneg %p114
      %p176 = scmp.lt.s32.totalorder %s18, 1
      %s177 = scalar_select %p176, %s18, 1
      %s178 = smul.addr %s177, 2
      %s179 = smul.addr %s178, 8
      %s180 = scalar_lea.vmem %s3, %s179
      %p181 = scmp.lt.s32.totalorder %s18, 1
      %s182 = scalar_select %p181, %s18, 1
      %p183 = scmp.lt.s32.totalorder %s19, 0
      %s184 = scalar_select %p183, %s19, 0
      %s185 = smul.addr %s182, 2
      %s186 = sadd.s32 %s184, %s185
      %s187 = smul.addr %s186, 8
      %s188 = scalar_lea.vmem %s0, %s187
      %p189 = scmp.lt.s32.totalorder %s18, 1
      %s190 = scalar_select %p189, %s18, 1
      %s191 = smul.addr %s190, 2
      %s192 = smul.addr %s191, 8
      %s193 = scalar_lea.vmem %s3, %s192
      %p194 = scmp.eq.s32.totalorder %s19, 0
      // Predicated region
      $region33: #{da_forward.1} parent=31 // pred_check
        %p195 = pneg %p194
      $region34: #{da_forward.1} parent=31 // pred_check_branch
        %197 = sbr.rel (%p195) target = $region36
      $region35: #{da_forward.1} parent=31 // pred_region
        %vm198 = vcmask 7168
        %199 = vst.msk [vmem:[#allocation2] sm:$0xff] %vm198, 0.0
        %200 = vst.msk [vmem:[#allocation2 + $0x8] sm:$0xff] %vm198, 0.0
      $region36: #{da_forward.1} parent=31 // pred_fallthru
        _
      %v201 = vld [vmem:[#allocation2] sm:$0xff]
      %v202 = vld [vmem:[#allocation2 + $0x8] sm:$0xff]
      %v203 = vld [vmem:[%s188] sm:$0xff]
      %v204 = vld [vmem:[%s188 + $0x8] sm:$0xff]
      %205 = vadd.xlane.f32.xlu0 %v203
      %v206 = vpop.xlane.xlu0 %205
      %207 = vadd.xlane.f32.xlu0 %v204
      %v208 = vpop.xlane.xlu0 %207
      %v209 = vadd.f32 %v201, %v206
      %v210 = vadd.f32 %v202, %v208
      %vm211 = vcmask 7168
      %212 = vst.msk [vmem:[#allocation2] sm:$0xff] %vm211, %v209
      %213 = vst.msk [vmem:[#allocation2 + $0x8] sm:$0xff] %vm211, %v210
      // Predicated region
      $region37: #{da_forward.1} parent=31 // pred_check
        %p214 = pneg %p194
      $region38: #{da_forward.1} parent=31 // pred_check_branch
        %216 = sbr.rel (%p214) target = $region40
      $region39: #{da_forward.1} parent=31 // pred_region
        %v217 = vld [vmem:[#allocation2] sm:$0xff]
        %v218 = vld [vmem:[#allocation2 + $0x8] sm:$0xff]
        %v219 = vmul.f32 %v217, 0.0078125
        %v220 = vmul.f32 %v218, 0.0078125
        %v221 = vld [vmem:[%s1] sm:$0xff]
        %vm222 = vcmask 130048
        %v224 = vsel %vm222, %v221, 0
        %226 = vmatpush.msra.mxu0 0.0
        %227 = vmatpush.msra.mxu0 0.0
        %228 = vmatpush.msra.mxu0 0.0
        %229 = vmatpush.msra.mxu0 0.0
        %230 = vmatpush.msra.mxu0 0.0
        %231 = vmatpush.msra.mxu0 0.0
        %232 = vmatpush.msra.mxu0 0.0
        %233 = vmatpush.msra.mxu0 0.0
        %234 = vmatpush.msra.mxu0 0.0
        %235 = vmatpush.msra.mxu0 0.0
        %236 = vmatpush.msra.mxu0 0.0
        %237 = vmatpush.msra.mxu0 0.0
        %238 = vmatpush.msra.mxu0 0.0
        %239 = vmatpush.msra.mxu0 0.0
        %240 = vmatpush.msra.mxu0 %v220
        %241 = vmatpush.msra.mxu0 %v219
        %242 = vmatmul.f32.gmra.mxu0 %v224
        %v243 = vpop.f32.mrf.mxu0
        %v244 = vadd.f32 0.0, %v243
        %245 = vdwg.mxu0
        %v246 = vmax.f32 %v244, 0.0
        %v247 = vld [vmem:[%s2] sm:$0xff]
        %v248 = vld [vmem:[%s2 + $0x8] sm:$0xff]
        %vm249 = vcmask 64512
        %v251 = vsel %vm249, %v247, 0
        %v254 = vsel %vm249, %v248, 0
        %256 = vmatpush.msra.mxu0 0.0
        %257 = vmatpush.msra.mxu0 0.0
        %258 = vmatpush.msra.mxu0 0.0
        %259 = vmatpush.msra.mxu0 0.0
        %260 = vmatpush.msra.mxu0 0.0
        %261 = vmatpush.msra.mxu0 0.0
        %262 = vmatpush.msra.mxu0 0.0
        %263 = vmatpush.msra.mxu0 0.0
        %264 = vmatpush.msra.mxu0 0.0
        %265 = vmatpush.msra.mxu0 0.0
        %266 = vmatpush.msra.mxu0 0.0
        %267 = vmatpush.msra.mxu0 0.0
        %268 = vmatpush.msra.mxu0 0.0
        %269 = vmatpush.msra.mxu0 0.0
        %270 = vmatpush.msra.mxu0 0.0
        %271 = vmatpush.msra.mxu0 %v246
        %272 = vmatmul.f32.gmra.mxu0 %v251
        %v273 = vpop.f32.mrf.mxu0
        %v274 = vadd.f32 0.0, %v273
        %275 = vmatmul.f32.gmra.mxu0 %v254
        %v276 = vpop.f32.mrf.mxu0
        %v277 = vadd.f32 0.0, %v276
        %278 = vdwg.mxu0
        %v279 = vsub.f32 0.0, %v274
        %v280 = vsub.f32 0.0, %v277
        %v281 = vmul.f32 %v279, 1.442695
        %v282 = vpow.pop %v281
        %v283 = vmul.f32 %v280, 1.442695
        %v284 = vpow.pop %v283
        %v285 = vadd.f32 %v282, 1.0
        %v286 = vadd.f32 %v284, 1.0
        %v287 = vrcp.pop %v285
        %v288 = vmul.f32 %v285, %v287
        %v289 = vsub.f32 1.0, %v288
        %v290 = vmul.f32 %v287, %v289
        %v291 = vadd.f32 %v287, %v290
        %vm292 = vweird.f32 %v285
        %vm293 = vweird.f32 %v287
        %vm294 = vmor %vm292, %vm293
        %v295 = vsel %vm294, %v287, %v291
        %v296 = vand.u32 2147483647, %v285
        %vm297 = vcmp.eq.f32.partialorder %v296, 8.507059e+37
        %v298 = vand.u32 %v285, 2147483648
        %v299 = vor.u32 1.1754944e-38, %v298
        %v300 = vsel %vm297, %v299, %v295
        %v301 = vmul.f32 1.0, %v300
        %v302 = vrcp.pop %v286
        %v303 = vmul.f32 %v286, %v302
        %v304 = vsub.f32 1.0, %v303
        %v305 = vmul.f32 %v302, %v304
        %v306 = vadd.f32 %v302, %v305
        %vm307 = vweird.f32 %v286
        %vm308 = vweird.f32 %v302
        %vm309 = vmor %vm307, %vm308
        %v310 = vsel %vm309, %v302, %v306
        %v311 = vand.u32 2147483647, %v286
        %vm312 = vcmp.eq.f32.partialorder %v311, 8.507059e+37
        %v313 = vand.u32 %v286, 2147483648
        %v314 = vor.u32 1.1754944e-38, %v313
        %v315 = vsel %vm312, %v314, %v310
        %v316 = vmul.f32 1.0, %v315
        %317 = vst.msk [vmem:[%s193] sm:$0xff] %vm211, %v301
        %318 = vst.msk [vmem:[%s193 + $0x8] sm:$0xff] %vm211, %v316
      $region40: #{da_forward.1} parent=31 // pred_fallthru
        _
      %p319 = scmp.lt.s32.totalorder %s18, 1
      %s320 = scalar_select %p319, %s18, 1
      %s321 = smul.addr %s320, 2
      %s322 = smul.addr %s321, 8
      %s323 = scalar_lea.vmem %s3, %s322
      // Predicated region
      $region41: #{da_forward.1} parent=31 // pred_check
        %p324 = pneg %p114
      $region42: #{da_forward.1} parent=31 // pred_check_branch
        %326 = sbr.rel (%p324) target = $region44
      $region43: #{da_forward.1} parent=31 // pred_region
        _
      $region44: #{da_forward.1} parent=31 // pred_fallthru
        _
    $region32: #{da_forward.1} parent=5 // pred_fallthru
      _
    %p327 = scmp.le.s32.totalorder 2, %s9
    // Predicated region
    $region45: #{da_forward.1} parent=5 // pred_check
      %p328 = pneg %p327
    $region46: #{da_forward.1} parent=5 // pred_check_branch
      %330 = sbr.rel (%p328) target = $region48
    $region47: #{da_forward.1} parent=5 // pred_region
      %s331 = ssub.s32 %s9, 2
      // Predicated region
      $region49: #{da_forward.1} parent=47 // pred_check
        %p332 = pneg %p120
      $region50: #{da_forward.1} parent=47 // pred_check_branch
        %334 = sbr.rel (%p332) target = $region52
      $region51: #{da_forward.1} parent=47 // pred_region
        %p335 = scmp.lt.s32.totalorder %s20, 1
        %s336 = scalar_select %p335, %s20, 1
        %s337 = smul.addr %s336, 2
        %s338 = smul.addr %s337, 8
        %s339 = scalar_lea.vmem %s3, %s338
      $region52: #{da_forward.1} parent=47 // pred_fallthru
        _
    $region48: #{da_forward.1} parent=5 // pred_fallthru
      _
  $region6: #{da_forward.1} parent=0 // loop_footer
    %s13 = sadd.s32 1, %s9
  $region7: #{da_forward.1} parent=0 // loop_footer_branch
    %8 = sbr.rel target = $region3
  $region8: #{da_forward.1} parent=0 // loop_exit
    _

</llo_original>
